<compile_context>
chip_gen: v7x
topology: tpu7x:2x2x1
jax: 0.10.0
libtpu: 0.0.40
codegen_flags: <defaults>
</compile_context>

<pallas_src>
import jax
import jax.numpy as jnp
from jax.experimental import pallas as pl
from jax.experimental.pallas import tpu as pltpu

OUTPUT_SIZE = 64      # PyTorch Output_size (Linear fan-in)
NUM_CLASSES = 10
SUBLANE = 8           # TPU vreg sublane count
MAX_TB = 8192         # batch rows per tile; ~12 MiB live double-buffered,
                      # fits v5e's 16 MiB scoped VMEM default; raise to
                      # 16384 on v6e/v7x (set vmem_limit_bytes if needed).


def _round_up(x, m):
    return ((x + m - 1) // m) * m


def _classifier_kernel(z_ref, wt_ref, b_ref, o_ref):
    # ReLU (VPU) -> MXU matmul in f32 -> bias add -> store (B, C) directly.
    z = jnp.maximum(z_ref[...], 0.0)
    acc = jnp.dot(z, wt_ref[...], preferred_element_type=jnp.float32)
    o_ref[...] = (acc + b_ref[...]).astype(o_ref.dtype)


@jax.jit
def classifier_forward(z, wt, b_row):
    """z: (B, 64) f32, wt: (64, C) f32 (= W.T), b_row: (1, C) f32.

    Returns (B, C) f32 == relu(z) @ W.T + b (nn.Linear semantics).
    """
    B, K = z.shape
    C = wt.shape[1]
    assert K == OUTPUT_SIZE and wt.shape[0] == K and b_row.shape == (1, C)

    # Tile the batch: multiple of 8 sublanes, capped by MAX_TB, and split so
    # that large batches yield >= 2 grid steps (v7x dual-TC utilization).
    TB = max(SUBLANE, min(MAX_TB, _round_up(pl.cdiv(B, 2), SUBLANE)))
    grid = (pl.cdiv(B, TB),)

    cost = pl.CostEstimate(
        flops=2 * B * K * C,
        transcendentals=0,
        bytes_accessed=(B * K + B * C + K * C + C) * 4,
    )

    return pl.pallas_call(
        _classifier_kernel,
        out_shape=jax.ShapeDtypeStruct((B, C), jnp.float32),
        grid_spec=pl.GridSpec(
            grid=grid,
            in_specs=[
                pl.BlockSpec((TB, K), lambda i: (i, 0)),   # z: tiled over batch
                pl.BlockSpec((K, C), lambda i: (0, 0)),    # W^T: resident
                pl.BlockSpec((1, C), lambda i: (0, 0)),    # bias row: resident
            ],
            out_specs=pl.BlockSpec((TB, C), lambda i: (i, 0)),
        ),
        compiler_params=pltpu.CompilerParams(
            dimension_semantics=("parallel",),
        ),
        cost_estimate=cost,
    )(z, wt, b_row)


def init_params(key, in_features=OUTPUT_SIZE, out_features=NUM_CLASSES):
    # Deterministic init mimicking nn.Linear default: U(-1/sqrt(fan_in), +1/sqrt(fan_in)).
    k_w, k_b = jax.random.split(key)
    bound = 1.0 / jnp.sqrt(jnp.float32(in_features))
    w = jax.random.uniform(
        k_w, (out_features, in_features), jnp.float32, -bound, bound
    )
    b = jax.random.uniform(k_b, (out_features,), jnp.float32, -bound, bound)
    return w, b


def prepare_params(w, b):
    # Hoisted once per parameter set (not per forward call).
    wt = jnp.asarray(w, jnp.float32).T              # (64, C)
    b_row = jnp.asarray(b, jnp.float32).reshape(1, -1)  # (1, C)
    return wt, b_row


if __name__ == "__main__":
    key = jax.random.PRNGKey(0)
    k_z, k_p = jax.random.split(key)

    B = 2
    z = jax.random.normal(k_z, (B, OUTPUT_SIZE), jnp.float32)
    w, b = init_params(k_p)
    wt, b_row = prepare_params(w, b)

    out = classifier_forward(z, wt, b_row)
    out = jax.block_until_ready(out)

    # Reference check in plain JAX (same semantics as the PyTorch module).
    ref = jnp.maximum(z, 0.0) @ w.T + b
    assert out.shape == (B, NUM_CLASSES)
    assert jnp.allclose(out, ref, atol=1e-5, rtol=1e-5)

    print("KERNEL_OK")
</pallas_src>

<mosaic_0001>
module attributes {stable_mosaic.version = 11 : i64} {
  func.func @_classifier_kernel(%arg0: i32, %arg1: memref<8x64xf32, #tpu.memory_space<vmem>>, %arg2: memref<64x10xf32, #tpu.memory_space<vmem>>, %arg3: memref<1x10xf32, #tpu.memory_space<vmem>>, %arg4: memref<8x10xf32, #tpu.memory_space<vmem>>) attributes {dimension_semantics = [#tpu.dimension_semantics<parallel>], iteration_bounds = array<i64: 1>, scalar_prefetch = 0 : i64, scratch_operands = 0 : i64, tpu.core_type = #tpu.core_type<tc>, window_params = [{transform_indices = @transform_0, window_bounds = array<i64: 8, 64>}, {pipeline_mode = #tpu.pipeline_mode<synchronous>, transform_indices = @transform_1, window_bounds = array<i64: 64, 10>}, {pipeline_mode = #tpu.pipeline_mode<synchronous>, transform_indices = @transform_2, window_bounds = array<i64: 1, 10>}, {transform_indices = @transform_3, window_bounds = array<i64: 8, 10>}]} {
    %c0 = arith.constant 0 : index
    %c0_0 = arith.constant 0 : index
    %0 = vector.load %arg1[%c0, %c0_0] : memref<8x64xf32, #tpu.memory_space<vmem>>, vector<8x64xf32>
    %cst = arith.constant 0.000000e+00 : f32
    %1 = vector.broadcast %cst : f32 to vector<8x64xf32>
    %2 = arith.maximumf %0, %1 : vector<8x64xf32>
    %c0_1 = arith.constant 0 : index
    %c0_2 = arith.constant 0 : index
    %3 = vector.load %arg2[%c0_1, %c0_2] : memref<64x10xf32, #tpu.memory_space<vmem>>, vector<64x10xf32>
    %cst_3 = arith.constant dense<0.000000e+00> : vector<8x10xf32>
    %4 = tpu.matmul %2, %3, %cst_3 {dimension_numbers = #tpu.dot_dimension_numbers<[1], [0], [0], [1], [0, 0, 1, 1], [], []>} : vector<8x64xf32>, vector<64x10xf32>, vector<8x10xf32> -> vector<8x10xf32>
    %c0_4 = arith.constant 0 : index
    %c0_5 = arith.constant 0 : index
    %5 = vector.load %arg3[%c0_4, %c0_5] : memref<1x10xf32, #tpu.memory_space<vmem>>, vector<1x10xf32>
    %6 = vector.broadcast %5 : vector<1x10xf32> to vector<8x10xf32>
    %7 = arith.addf %4, %6 : vector<8x10xf32>
    %c0_6 = arith.constant 0 : index
    %c0_7 = arith.constant 0 : index
    %8 = vector.load %arg4[%c0_6, %c0_7] : memref<8x10xf32, #tpu.memory_space<vmem>>, vector<8x10xf32>
    tpu.vector_store %arg4[%c0_6, %c0_7], %7 {strides = array<i32>} : memref<8x10xf32, #tpu.memory_space<vmem>>, vector<8x10xf32>,
    return
  }
  func.func @transform_0(%arg0: i32) -> (i32, i32) {
    %c0_i32 = arith.constant 0 : i32
    %c0_i32_0 = arith.constant 0 : i32
    return %arg0, %c0_i32 : i32, i32
  }
  func.func @transform_1(%arg0: i32) -> (i32, i32) {
    %c0_i32 = arith.constant 0 : i32
    %c0_i32_0 = arith.constant 0 : i32
    %c0_i32_1 = arith.constant 0 : i32
    return %c0_i32, %c0_i32_0 : i32, i32
  }
  func.func @transform_2(%arg0: i32) -> (i32, i32) {
    %c0_i32 = arith.constant 0 : i32
    %c0_i32_0 = arith.constant 0 : i32
    %c0_i32_1 = arith.constant 0 : i32
    return %c0_i32, %c0_i32_0 : i32, i32
  }
  func.func @transform_3(%arg0: i32) -> (i32, i32) {
    %c0_i32 = arith.constant 0 : i32
    %c0_i32_0 = arith.constant 0 : i32
    return %arg0, %c0_i32 : i32, i32
  }
}

</mosaic_0001>

<llo_original>
// kernel: classifier_forward.1
$region0: #{classifier_forward.1}
  #allocation0 [shape = 'u32[]', space=smem, size = 0x4, offset = 0x4, fixed_abs, tag = 'smem constant byte address 0x4 - core index']
  #allocation1 [shape = 'u32[144,128]{1,0:T(1,128)}', space=vmem, size = 0x12000, scoped, tag = 'internal scratch']
  %s0 = inlined_call_operand.vmem [shape: f32[2,64], index: 0, kind: input, shape index: {}]
  %s1 = inlined_call_operand.vmem [shape: f32[64,10], index: 1, kind: input, shape index: {}]
  %s2 = inlined_call_operand.vmem [shape: f32[1,10], index: 2, kind: input, shape index: {}]
  %s3 = inlined_call_operand.hbm [shape: f32[2,10], index: 3, kind: output, shape index: {}]
  %s4 = sld [smem:[#allocation0]]
  $region22: #{classifier_forward.1} parent=0
    _
  %s6 = ssub.s32 1, %s4
  %s7 = scalar_select 0, %s6, %s4
  $region1: #{classifier_forward.1} parent=0
    #allocation2 [shape = 'u8[4096]{0}', space=vmem, size = 0x1000, scoped, tag = 'output window, operand 0, single buffered']
    #allocation3 [shape = 's32[1]{0}', space=sflag, size = 0x4, scoped, tag = 'scoped memory for classifier_forward.1']
    %8 = vsyncpa [#allocation3], 0
    // Predicated region
    $region2: #{classifier_forward.1} parent=1 // pred_check
      _
    $region3: #{classifier_forward.1} parent=1 // pred_check_branch
      %10 = sbr.rel (0) target = $region5
    $region4: #{classifier_forward.1} parent=1 // pred_region
      _
    $region5: #{classifier_forward.1} parent=1 // pred_fallthru
      _
    // Predicated region
    $region6: #{classifier_forward.1} parent=1 // pred_check
      _
    $region7: #{classifier_forward.1} parent=1 // pred_check_branch
      %12 = sbr.rel (0) target = $region9
    $region8: #{classifier_forward.1} parent=1 // pred_region
      _
    $region9: #{classifier_forward.1} parent=1 // pred_fallthru
      _
    // Predicated region
    $region10: #{classifier_forward.1} parent=1 // pred_check
      _
    $region11: #{classifier_forward.1} parent=1 // pred_check_branch
      %14 = sbr.rel (0) target = $region13
    $region12: #{classifier_forward.1} parent=1 // pred_region
      _
    $region13: #{classifier_forward.1} parent=1 // pred_fallthru
      _
    %v15 = vld [vmem:[%s0] sm:$0xff]
    %v16 = vmax.f32 %v15, 0.0
    %v17 = vld [vmem:[%s1] sm:$0xff]
    %v18 = vld [vmem:[%s1 + $0x8] sm:$0xff]
    %v19 = vld [vmem:[%s1 + $0x10] sm:$0xff]
    %v20 = vld [vmem:[%s1 + $0x18] sm:$0xff]
    %v21 = vld [vmem:[%s1 + $0x20] sm:$0xff]
    %v22 = vld [vmem:[%s1 + $0x28] sm:$0xff]
    %v23 = vld [vmem:[%s1 + $0x30] sm:$0xff]
    %v24 = vld [vmem:[%s1 + $0x38] sm:$0xff]
    %v25 = vld [vmem:[%s2] sm:$0x1]
    %v27 = vlaneseq
    %v28 = vshrl.u32 %v27, 7
    %v29 = vsub.s32 0, %v28
    %v30 = vrot.slane %v25, %v29
    %vm32 = vcmask 523264
    %v34 = vsel %vm32, %v16, 0
    %36 = vmatprep.subr.mxu0 0.0
    %37 = vmatpush1.msra.mxu0 %v17
    %38 = vmatprep.subr.mxu0 0.0
    %39 = vmatpush1.msra.mxu0 %v18
    %40 = vmatprep.subr.mxu0 0.0
    %41 = vmatpush1.msra.mxu0 %v19
    %42 = vmatprep.subr.mxu0 0.0
    %43 = vmatpush1.msra.mxu0 %v20
    %44 = vmatprep.subr.mxu0 0.0
    %45 = vmatpush1.msra.mxu0 %v21
    %46 = vmatprep.subr.mxu0 0.0
    %47 = vmatpush1.msra.mxu0 %v22
    %48 = vmatprep.subr.mxu0 0.0
    %49 = vmatpush1.msra.mxu0 %v23
    %50 = vmatprep.subr.mxu0 0.0
    %51 = vmatpush1.msra.mxu0 %v24
    %52 = vmatprep.subr.mxu0 0.0
    %53 = vmatpush1.msra.mxu0 0.0
    %54 = vmatprep.subr.mxu0 0.0
    %55 = vmatpush1.msra.mxu0 0.0
    %56 = vmatprep.subr.mxu0 0.0
    %57 = vmatpush1.msra.mxu0 0.0
    %58 = vmatprep.subr.mxu0 0.0
    %59 = vmatpush1.msra.mxu0 0.0
    %60 = vmatprep.subr.mxu0 0.0
    %61 = vmatpush1.msra.mxu0 0.0
    %62 = vmatprep.subr.mxu0 0.0
    %63 = vmatpush1.msra.mxu0 0.0
    %64 = vmatprep.subr.mxu0 0.0
    %65 = vmatpush1.msra.mxu0 0.0
    %66 = vmatprep.subr.mxu0 0.0
    %67 = vmatpush1.msra.mxu0 0.0
    %68 = vmatprep.subr.mxu0 0.0
    %69 = vmatpush1.msra.mxu0 0.0
    %70 = vmatprep.subr.mxu0 0.0
    %71 = vmatpush1.msra.mxu0 0.0
    %72 = vmatprep.subr.mxu0 0.0
    %73 = vmatpush1.msra.mxu0 0.0
    %74 = vmatprep.subr.mxu0 0.0
    %75 = vmatpush1.msra.mxu0 0.0
    %76 = vmatprep.subr.mxu0 0.0
    %77 = vmatpush1.msra.mxu0 0.0
    %78 = vmatprep.subr.mxu0 0.0
    %79 = vmatpush1.msra.mxu0 0.0
    %80 = vmatprep.subr.mxu0 0.0
    %81 = vmatpush1.msra.mxu0 0.0
    %82 = vmatprep.subr.mxu0 0.0
    %83 = vmatpush1.msra.mxu0 0.0
    %84 = vmatprep.subr.mxu0 0.0
    %85 = vmatpush1.msra.mxu0 0.0
    %86 = vmatprep.subr.mxu0 0.0
    %87 = vmatpush1.msra.mxu0 0.0
    %88 = vmatprep.subr.mxu0 0.0
    %89 = vmatpush1.msra.mxu0 0.0
    %90 = vmatprep.subr.mxu0 0.0
    %91 = vmatpush1.msra.mxu0 0.0
    %92 = vmatprep.subr.mxu0 0.0
    %93 = vmatpush1.msra.mxu0 0.0
    %94 = vmatprep.subr.mxu0 0.0
    %95 = vmatpush1.msra.mxu0 0.0
    %96 = vmatprep.subr.mxu0 0.0
    %97 = vmatpush1.msra.mxu0 0.0
    %98 = vmatprep.subr.mxu0 0.0
    %99 = vmatpush1.msra.mxu0 0.0
    %100 = vmatprep.mubr.f32.mxu0 0.0
    %101 = vmatmul.mubr.f32.gmra.mrb[0].mxu0 %v34
    %v102 = vpop.f32.mrb[0].mxu0
    %v103 = vadd.f32 %v30, %v102
    %v104 = vpop.f32.mrb[0].mxu0
    %105 = vdwg.mxu0
    %vm106 = vcmask 80896
    %107 = vst.msk [vmem:[#allocation2] sm:$0xff] %vm106, %v103
    // Predicated region
    $region14: #{classifier_forward.1} parent=1 // pred_check
      _
    $region15: #{classifier_forward.1} parent=1 // pred_check_branch
      %109 = sbr.rel (0) target = $region17
    $region16: #{classifier_forward.1} parent=1 // pred_region
      %s111 = ssub.s32 128, 32
      %112 = vsyncadd [#allocation3], %s111
      %s113 = sshll.u32 [#allocation2], 4
      %s114 = int_to_ptr.vmem [resolvable:$true] %s113
      %119 = dma.vmem_to_hbm [thread:$0]  %s114, 32, %s3, [#allocation3], 32, 32, 2
    $region17: #{classifier_forward.1} parent=1 // pred_fallthru
      _
    // Predicated region
    $region18: #{classifier_forward.1} parent=1 // pred_check
      _
    $region19: #{classifier_forward.1} parent=1 // pred_check_branch
      %121 = sbr.rel (0) target = $region21
    $region20: #{classifier_forward.1} parent=1 // pred_region
      %122 = dma.done [#allocation3], 128
    $region21: #{classifier_forward.1} parent=1 // pred_fallthru
      _
    %123 = vsyncpa [#allocation3], 1

</llo_original>
